<compile_context>
chip_gen: v6e
topology: v6e:2x2x1
jax: 0.10.0
libtpu: 0.0.40
codegen_flags: <defaults>
</compile_context>

<pallas_src>
import functools

import jax
import jax.numpy as jnp
from jax import lax
from jax.experimental import pallas as pl
from jax.experimental.pallas import tpu as pltpu

LANES = 128
SUBLANES = 8


def _fold_to_vreg(tile, tile_rows):
    """(tile_rows, 128) -> (8, 128) partial sum using leading-axis vreg adds."""
    return jnp.sum(tile.reshape(tile_rows // SUBLANES, SUBLANES, LANES), axis=0)


def _mixloss_kernel(x_ref, t_ref, acc_ref, *, alpha, tile_rows,
                    tiles_per_split, n_tiles, valid_rows, need_mask):
    """Accumulate sum((1-a)*d^2 + a*|d|) for this split into an (8,128) slab."""
    c = pl.program_id(0)   # parallel split (sharded across TensorCores on v7x)
    i = pl.program_id(1)   # sequential reduction axis within the split

    @pl.when(i == 0)
    def _init():
        acc_ref[...] = jnp.zeros_like(acc_ref)

    # Cast after load (no extra HBM traffic); f32 accumulation is accurate for
    # bf16 inputs and works on all generations (v5e VPU has no bf16).
    x = x_ref[...].astype(jnp.float32)
    t = t_ref[...].astype(jnp.float32)
    d = x - t

    # Per-element blend; mean of blends == blend of means (same element count).
    mixed = (1.0 - alpha) * (d * d) + alpha * jnp.abs(d)

    if not need_mask:
        # Aligned fast path: every block is full and valid -> no mask code at all.
        acc_ref[...] += _fold_to_vreg(mixed, tile_rows)
    else:
        block_idx = c * tiles_per_split + i
        last = n_tiles - 1

        @pl.when(block_idx < last)
        def _full():
            acc_ref[...] += _fold_to_vreg(mixed, tile_rows)

        @pl.when(block_idx == last)
        def _tail():
            # Mask rows past the end of the input slab (partial last block has
            # unspecified pad contents on the DMA read).
            row_ids = block_idx * tile_rows + lax.broadcasted_iota(
                jnp.int32, (tile_rows, LANES), 0)
            masked = jnp.where(row_ids < valid_rows, mixed, 0.0)
            acc_ref[...] += _fold_to_vreg(masked, tile_rows)

        # block_idx > last: clamped-duplicate block -> skip (no accumulate).


def mix_loss(x, target, *, alpha, dim=2, tile_rows=1024, n_splits=2):
    """JAX/Pallas equivalent of MixLoss(MSELoss(), L1Loss(), alpha, dim).forward."""
    # Match PyTorch: cast target to x's dtype if they differ.
    if target.dtype != x.dtype:
        target = target.astype(x.dtype)
    # dim == 3 path: drop the leading channel of a 5D volume.
    if dim == 3:
        x = x[:, 0]
        target = target[:, 0]

    n_elems = x.size
    xf = x.reshape(-1)
    tf = target.reshape(-1)

    # Pad only up to the next 8*128 = 1024-element boundary so the flat data can
    # be viewed as a lane-dense (rows, 128) slab with rows a multiple of 8.
    # Zero padding contributes nothing to either error term; we divide by the
    # true element count. For typical ML shapes this pad is empty (no HBM copy).
    pad = (-n_elems) % (SUBLANES * LANES)
    if pad:
        xf = jnp.pad(xf, (0, pad))
        tf = jnp.pad(tf, (0, pad))
    rows = xf.size // LANES
    x2d = xf.reshape(rows, LANES)
    t2d = tf.reshape(rows, LANES)

    # Tile choice: as large as the data allows, capped at `tile_rows`, multiple of 8.
    tr = min(int(tile_rows), rows)
    tr -= tr % SUBLANES
    tr = max(tr, SUBLANES)

    n_tiles = pl.cdiv(rows, tr)
    ns = max(1, min(int(n_splits), n_tiles))
    tiles_per_split = pl.cdiv(n_tiles, ns)

    # Compile-time: do we need any tail/duplicate masking at all?
    need_mask = (rows % tr != 0) or (ns * tiles_per_split != n_tiles)

    def in_map(c, i):
        # Clamp so no DMA is ever issued for a block wholly past the array end;
        # clamped (duplicate) blocks are skipped inside the kernel.
        return (jnp.minimum(c * tiles_per_split + i, n_tiles - 1), 0)

    kernel = functools.partial(
        _mixloss_kernel,
        alpha=float(alpha),
        tile_rows=tr,
        tiles_per_split=tiles_per_split,
        n_tiles=n_tiles,
        valid_rows=rows,
        need_mask=need_mask,
    )

    partials = pl.pallas_call(
        kernel,
        out_shape=jax.ShapeDtypeStruct((ns, SUBLANES, LANES), jnp.float32),
        grid_spec=pltpu.PrefetchScalarGridSpec(
            num_scalar_prefetch=0,
            grid=(ns, tiles_per_split),
            in_specs=[
                pl.BlockSpec((tr, LANES), in_map),
                pl.BlockSpec((tr, LANES), in_map),
            ],
            # Per-split resident accumulator slab (leading dim squeezed).
            out_specs=pl.BlockSpec((None, SUBLANES, LANES),
                                   lambda c, i: (c, 0, 0)),
        ),
        compiler_params=pltpu.CompilerParams(
            dimension_semantics=("parallel", "arbitrary"),
        ),
    )(x2d, t2d)

    # Single tiny cross-lane reduction + normalization outside the kernel.
    return jnp.sum(partials) / jnp.float32(n_elems)


def _reference(x, target, alpha):
    d = x.astype(jnp.float32) - target.astype(jnp.float32)
    return (1.0 - alpha) * jnp.mean(d * d) + alpha * jnp.mean(jnp.abs(d))


if __name__ == "__main__":
    key = jax.random.PRNGKey(0)
    kx, kt, kx2, kt2, kx3, kt3 = jax.random.split(key, 6)
    alpha = 0.3

    # Case 1: NCHW, dim=2 path (2048 elements -> one lane-dense tile, no pad,
    # aligned fast path, no mask code emitted).
    B, C, H, W = 2, 4, 16, 16
    x = jax.random.normal(kx, (B, C, H, W), dtype=jnp.float32)
    target = jax.random.normal(kt, (B, C, H, W), dtype=jnp.float32)
    loss = jax.block_until_ready(mix_loss(x, target, alpha=alpha, dim=2))
    ref = _reference(x, target, alpha)
    assert jnp.allclose(loss, ref, rtol=1e-5, atol=1e-5), (loss, ref)

    # Case 2: awkward shape + small tile to exercise padding, the pl.when-gated
    # tail-block mask, the 2-way parallel split, and duplicate-block skipping.
    x2 = jax.random.normal(kx2, (2, 3, 37, 19), dtype=jnp.float32)
    t2 = jax.random.normal(kt2, (2, 3, 37, 19), dtype=jnp.float32)
    loss2 = jax.block_until_ready(
        mix_loss(x2, t2, alpha=alpha, dim=2, tile_rows=16, n_splits=2))
    ref2 = _reference(x2, t2, alpha)
    assert jnp.allclose(loss2, ref2, rtol=1e-5, atol=1e-5), (loss2, ref2)

    # Case 3: aligned multi-tile with a 2-way split (fast path, no masking).
    x3 = jax.random.normal(kx3, (4, 8, 32, 32), dtype=jnp.float32)
    t3 = jax.random.normal(kt3, (4, 8, 32, 32), dtype=jnp.float32)
    loss3 = jax.block_until_ready(
        mix_loss(x3, t3, alpha=alpha, dim=2, tile_rows=64, n_splits=2))
    ref3 = _reference(x3, t3, alpha)
    assert jnp.allclose(loss3, ref3, rtol=1e-5, atol=1e-5), (loss3, ref3)

    print("KERNEL_OK")
</pallas_src>

<mosaic_0001>
module attributes {stable_mosaic.version = 11 : i64} {
  func.func @_mixloss_kernel(%arg0: i32, %arg1: i32, %arg2: memref<16x128xf32, #tpu.memory_space<vmem>>, %arg3: memref<16x128xf32, #tpu.memory_space<vmem>>, %arg4: memref<1x8x128xf32, #tpu.memory_space<vmem>>) attributes {dimension_semantics = [#tpu.dimension_semantics<parallel>, #tpu.dimension_semantics<arbitrary>], iteration_bounds = array<i64: 1, 1>, scalar_prefetch = 0 : i64, scratch_operands = 0 : i64, tpu.core_type = #tpu.core_type<tc>, window_params = [{transform_indices = @transform_0, window_bounds = array<i64: 16, 128>}, {transform_indices = @transform_1, window_bounds = array<i64: 16, 128>}, {transform_indices = @transform_2, window_bounds = array<i64: 1, 8, 128>}]} {
    %c0_i32 = arith.constant 0 : i32
    %0 = arith.cmpi eq, %arg1, %c0_i32 : i32
    %1 = arith.extui %0 : i1 to i32
    %c0_i32_0 = arith.constant 0 : i32
    %2 = arith.cmpi ne, %1, %c0_i32_0 : i32
    scf.if %2 {
      %cst_12 = arith.constant 0.000000e+00 : f32
      %21 = vector.broadcast %cst_12 : f32 to vector<8x128xf32>
      %c0_13 = arith.constant 0 : index
      %c0_14 = arith.constant 0 : index
      %c0_15 = arith.constant 0 : index
      %22 = vector.load %arg4[%c0_13, %c0_14, %c0_15] : memref<1x8x128xf32, #tpu.memory_space<vmem>>, vector<1x8x128xf32>
      %23 = vector.shape_cast %22 : vector<1x8x128xf32> to vector<8x128xf32>
      %24 = vector.shape_cast %21 : vector<8x128xf32> to vector<1x8x128xf32>
      tpu.vector_store %arg4[%c0_13, %c0_14, %c0_15], %24 {strides = array<i32>} : memref<1x8x128xf32, #tpu.memory_space<vmem>>, vector<1x8x128xf32>,
    } else {
    }
    %c0 = arith.constant 0 : index
    %c0_1 = arith.constant 0 : index
    %3 = vector.load %arg2[%c0, %c0_1] : memref<16x128xf32, #tpu.memory_space<vmem>>, vector<16x128xf32>
    %c0_2 = arith.constant 0 : index
    %c0_3 = arith.constant 0 : index
    %4 = vector.load %arg3[%c0_2, %c0_3] : memref<16x128xf32, #tpu.memory_space<vmem>>, vector<16x128xf32>
    %5 = arith.subf %3, %4 : vector<16x128xf32>
    %6 = arith.mulf %5, %5 : vector<16x128xf32>
    %cst = arith.constant 0.699999988 : f32
    %7 = vector.broadcast %cst : f32 to vector<16x128xf32>
    %8 = arith.mulf %7, %6 : vector<16x128xf32>
    %9 = math.absf %5 : vector<16x128xf32>
    %cst_4 = arith.constant 3.000000e-01 : f32
    %10 = vector.broadcast %cst_4 : f32 to vector<16x128xf32>
    %11 = arith.mulf %10, %9 : vector<16x128xf32>
    %12 = arith.addf %8, %11 : vector<16x128xf32>
    %c0_5 = arith.constant 0 : index
    %c0_6 = arith.constant 0 : index
    %c0_7 = arith.constant 0 : index
    %13 = vector.load %arg4[%c0_5, %c0_6, %c0_7] : memref<1x8x128xf32, #tpu.memory_space<vmem>>, vector<1x8x128xf32>
    %14 = vector.shape_cast %13 : vector<1x8x128xf32> to vector<8x128xf32>
    %15 = vector.shape_cast %12 : vector<16x128xf32> to vector<2x8x128xf32>
    %cst_8 = arith.constant dense<0.000000e+00> : vector<8x128xf32>
    %16 = vector.multi_reduction <add>, %15, %cst_8 [0] : vector<2x8x128xf32> to vector<8x128xf32>
    %17 = arith.addf %14, %16 : vector<8x128xf32>
    %c0_9 = arith.constant 0 : index
    %c0_10 = arith.constant 0 : index
    %c0_11 = arith.constant 0 : index
    %18 = vector.load %arg4[%c0_9, %c0_10, %c0_11] : memref<1x8x128xf32, #tpu.memory_space<vmem>>, vector<1x8x128xf32>
    %19 = vector.shape_cast %18 : vector<1x8x128xf32> to vector<8x128xf32>
    %20 = vector.shape_cast %17 : vector<8x128xf32> to vector<1x8x128xf32>
    tpu.vector_store %arg4[%c0_9, %c0_10, %c0_11], %20 {strides = array<i32>} : memref<1x8x128xf32, #tpu.memory_space<vmem>>, vector<1x8x128xf32>,
    return
  }
  func.func @transform_0(%arg0: i32, %arg1: i32) -> (i32, i32) {
    %c1_i32 = arith.constant 1 : i32
    %0 = arith.muli %arg0, %c1_i32 : i32
    %1 = arith.addi %0, %arg1 : i32
    %c0_i32 = arith.constant 0 : i32
    %2 = arith.minsi %1, %c0_i32 : i32
    %c0_i32_0 = arith.constant 0 : i32
    %c0_i32_1 = arith.constant 0 : i32
    return %2, %c0_i32_0 : i32, i32
  }
  func.func @transform_1(%arg0: i32, %arg1: i32) -> (i32, i32) {
    %c1_i32 = arith.constant 1 : i32
    %0 = arith.muli %arg0, %c1_i32 : i32
    %1 = arith.addi %0, %arg1 : i32
    %c0_i32 = arith.constant 0 : i32
    %2 = arith.minsi %1, %c0_i32 : i32
    %c0_i32_0 = arith.constant 0 : i32
    %c0_i32_1 = arith.constant 0 : i32
    return %2, %c0_i32_0 : i32, i32
  }
  func.func @transform_2(%arg0: i32, %arg1: i32) -> (i32, i32, i32) {
    %c0_i32 = arith.constant 0 : i32
    %c0_i32_0 = arith.constant 0 : i32
    %c0_i32_1 = arith.constant 0 : i32
    return %arg0, %c0_i32, %c0_i32_0 : i32, i32, i32
  }
}

</mosaic_0001>

<llo_original>
// kernel: tpu_custom_call.1
$region0: #{tpu_custom_call.1}
  #allocation0 [shape = 'u32[]', space=smem, size = 0x4, offset = 0x4, fixed_abs, tag = 'smem constant byte address 0x4 - core index']
  #allocation1 [shape = 'u32[144,128]{1,0:T(1,128)}', space=vmem, size = 0x12000, scoped, tag = 'internal scratch']
  %s0 = inlined_call_operand.hbm [shape: f32[16,128], index: 0, kind: input, shape index: {}]
  %s1 = inlined_call_operand.hbm [shape: f32[16,128], index: 1, kind: input, shape index: {}]
  %s2 = inlined_call_operand.hbm [shape: f32[1,8,128], index: 2, kind: output, shape index: {}]
  %s3 = sld [smem:[#allocation0]]
  $region30: #{tpu_custom_call.1} parent=0
    _
  %s5 = ssub.s32 1, %s3
  %s6 = scalar_select 0, %s5, %s3
  $region1: #{tpu_custom_call.1} parent=0
    #allocation2 [shape = 'u8[8192]{0}', space=vmem, size = 0x2000, scoped, tag = 'input window, operand 0, single buffered']
    #allocation3 [shape = 's32[1]{0}', space=sflag, size = 0x4, scoped, tag = 'scoped memory for tpu_custom_call.1']
    #allocation4 [shape = 's32[1]{0}', space=sflag, size = 0x4, scoped, tag = 'scoped memory for tpu_custom_call.1']
    #allocation5 [shape = 'u8[8192]{0}', space=vmem, size = 0x2000, scoped, tag = 'input window, operand 1, single buffered']
    #allocation6 [shape = 's32[1]{0}', space=sflag, size = 0x4, scoped, tag = 'scoped memory for tpu_custom_call.1']
    #allocation7 [shape = 'u8[4096]{0}', space=vmem, size = 0x1000, scoped, tag = 'output window, operand 0, single buffered']
    %7 = vsyncpa [#allocation3], 0
    %8 = vsyncpa [#allocation6], 0
    %9 = vsyncpa [#allocation4], 0
    // Predicated region
    $region2: #{tpu_custom_call.1} parent=1 // pred_check
      _
    $region3: #{tpu_custom_call.1} parent=1 // pred_check_branch
      %11 = sbr.rel (0) target = $region5
    $region4: #{tpu_custom_call.1} parent=1 // pred_region
      %s12 = sadd.s32 0, 0
      %p13 = scmp.lt.s32.totalorder %s12, 0
      %s14 = scalar_select %p13, %s12, 0
      %s15 = smul.u32 2, %s14
      %s17 = ssub.s32 256, 256
      %18 = vsyncadd [#allocation3], %s17
      %s19 = smul.addr %s15, 128
      %s20 = scalar_lea.hbm %s0, %s19
      %s21 = sshll.u32 [#allocation2], 4
      %s22 = int_to_ptr.vmem [resolvable:$true] %s21
      %27 = dma.hbm_to_vmem [thread:$0]  %s20, 256, %s22, [#allocation3], 128, 128, 8
    $region5: #{tpu_custom_call.1} parent=1 // pred_fallthru
      _
    // Predicated region
    $region6: #{tpu_custom_call.1} parent=1 // pred_check
      _
    $region7: #{tpu_custom_call.1} parent=1 // pred_check_branch
      %29 = sbr.rel (0) target = $region9
    $region8: #{tpu_custom_call.1} parent=1 // pred_region
      %s30 = sadd.s32 0, 0
      %p31 = scmp.lt.s32.totalorder %s30, 0
      %s32 = scalar_select %p31, %s30, 0
      %s33 = smul.u32 2, %s32
      %s35 = ssub.s32 256, 256
      %36 = vsyncadd [#allocation6], %s35
      %s37 = smul.addr %s33, 128
      %s38 = scalar_lea.hbm %s1, %s37
      %s39 = sshll.u32 [#allocation5], 4
      %s40 = int_to_ptr.vmem [resolvable:$true] %s39
      %45 = dma.hbm_to_vmem [thread:$0]  %s38, 256, %s40, [#allocation6], 128, 128, 8
    $region9: #{tpu_custom_call.1} parent=1 // pred_fallthru
      _
    // Predicated region
    $region10: #{tpu_custom_call.1} parent=1 // pred_check
      _
    $region11: #{tpu_custom_call.1} parent=1 // pred_check_branch
      %47 = sbr.rel (0) target = $region13
    $region12: #{tpu_custom_call.1} parent=1 // pred_region
      %48 = dma.done [#allocation3], 256
    $region13: #{tpu_custom_call.1} parent=1 // pred_fallthru
      _
    // Predicated region
    $region14: #{tpu_custom_call.1} parent=1 // pred_check
      _
    $region15: #{tpu_custom_call.1} parent=1 // pred_check_branch
      %50 = sbr.rel (0) target = $region17
    $region16: #{tpu_custom_call.1} parent=1 // pred_region
      %51 = dma.done [#allocation6], 256
    $region17: #{tpu_custom_call.1} parent=1 // pred_fallthru
      _
    %s52 = sadd.s32 0, 0
    %p53 = scmp.lt.s32.totalorder %s52, 0
    %s54 = scalar_select %p53, %s52, 0
    %s55 = smul.u32 2, %s54
    %s56 = sadd.s32 0, 0
    %p57 = scmp.lt.s32.totalorder %s56, 0
    %s58 = scalar_select %p57, %s56, 0
    %s59 = smul.u32 2, %s58
    %p60 = scmp.eq.s32.totalorder 0, 0
    // Predicated region
    $region18: #{tpu_custom_call.1} parent=1 // pred_check
      %p61 = pneg %p60
    $region19: #{tpu_custom_call.1} parent=1 // pred_check_branch
      %63 = sbr.rel (%p61) target = $region21
    $region20: #{tpu_custom_call.1} parent=1 // pred_region
      %64 = vst [vmem:[#allocation7] sm:$0xff] 0.0
    $region21: #{tpu_custom_call.1} parent=1 // pred_fallthru
      _
    %v65 = vld [vmem:[#allocation2] sm:$0xff]
    %v66 = vld [vmem:[#allocation2 + $0x8] sm:$0xff]
    %v67 = vld [vmem:[#allocation5] sm:$0xff]
    %v68 = vld [vmem:[#allocation5 + $0x8] sm:$0xff]
    %v69 = vsub.f32 %v65, %v67
    %v70 = vsub.f32 %v66, %v68
    %v71 = vmul.f32 %v69, %v69
    %v72 = vmul.f32 %v70, %v70
    %v73 = vmul.f32 %v71, 0.7
    %v74 = vmul.f32 %v72, 0.7
    %v75 = vand.u32 2147483647, %v69
    %v76 = vand.u32 2147483647, %v70
    %v77 = vmul.f32 %v75, 0.3
    %v78 = vmul.f32 %v76, 0.3
    %v79 = vadd.f32 %v73, %v77
    %v80 = vadd.f32 %v74, %v78
    %v81 = vld [vmem:[#allocation7] sm:$0xff]
    %v82 = vadd.f32 %v79, %v80
    %v83 = vadd.f32 %v81, %v82
    %84 = vst [vmem:[#allocation7] sm:$0xff] %v83
    // Predicated region
    $region22: #{tpu_custom_call.1} parent=1 // pred_check
      _
    $region23: #{tpu_custom_call.1} parent=1 // pred_check_branch
      %86 = sbr.rel (0) target = $region25
    $region24: #{tpu_custom_call.1} parent=1 // pred_region
      %s88 = ssub.s32 128, 128
      %89 = vsyncadd [#allocation4], %s88
      %s91 = sshll.u32 [#allocation7], 4
      %s92 = int_to_ptr.vmem [resolvable:$true] %s91
      %94 = dma.vmem_to_hbm [thread:$0]  %s92, 128, %s2, [#allocation4]
    $region25: #{tpu_custom_call.1} parent=1 // pred_fallthru
      _
    // Predicated region
    $region26: #{tpu_custom_call.1} parent=1 // pred_check
      _
    $region27: #{tpu_custom_call.1} parent=1 // pred_check_branch
      %96 = sbr.rel (0) target = $region29
    $region28: #{tpu_custom_call.1} parent=1 // pred_region
      %97 = dma.done [#allocation4], 128
    $region29: #{tpu_custom_call.1} parent=1 // pred_fallthru
      _
    %98 = vsyncpa [#allocation3], 1
    %99 = vsyncpa [#allocation6], 1
    %100 = vsyncpa [#allocation4], 1

</llo_original>
